<compile_context>
chip_gen: v7x
topology: tpu7x:2x2x1
jax: 0.10.0
libtpu: 0.0.40
codegen_flags: <defaults>
</compile_context>

<pallas_src>
import math

import jax
import jax.numpy as jnp
from jax.experimental import pallas as pl
from jax.experimental.pallas import tpu as pltpu


def _round_up(x, m):
    return ((x + m - 1) // m) * m


# ----------------------------- Pallas kernels --------------------------------
def rating_layer_kernel(emb_ref, wpk_ref, sel_ref, g_ref, hid_ref):
    # emb_ref: (tm, D)    bf16  scale-folded embeddings for this row tile
    # wpk_ref: (D, RHp)   bf16  all rating weights packed + pre-transposed (lane-dense)
    # sel_ref: (tm, RHp)  bf16  one-hot (per rating block) row selector
    # g_ref:   (RHp, Hp)  bf16  0/1 collapse matrix (rating blocks -> H, padded to 128)
    # hid_ref: (tm, Hp)   bf16  lane-dense hidden output (fed straight to the next matmul)
    wide = jnp.dot(emb_ref[...], wpk_ref[...], preferred_element_type=jnp.float32)
    masked = (sel_ref[...] * wide).astype(wpk_ref.dtype)
    hid = jnp.dot(masked, g_ref[...], preferred_element_type=jnp.float32)
    hid_ref[...] = hid.astype(hid_ref.dtype)


def aggregate_sage_kernel(adj_ref, hid_ref, w2t_ref, out_ref):
    # adj_ref: (tm, Np)  bf16  0/1 SUM-aggregation mask rows for this tile
    # hid_ref: (Np, Hp)  bf16  hidden embeddings of all unique neighbor nodes
    # w2t_ref: (Hp, Op)  bf16  SageLayer2 weight, pre-transposed and zero-padded
    # out_ref: (tm, Op)  f32
    agg = jnp.dot(adj_ref[...], hid_ref[...], preferred_element_type=jnp.float32)
    comb = jnp.where(agg >= 0, agg, 0.1 * agg)            # F.leaky_relu(., 0.1)
    out = jnp.dot(comb.astype(w2t_ref.dtype), w2t_ref[...],
                  preferred_element_type=jnp.float32)
    out_ref[...] = jnp.where(out >= 0, out, 0.1 * out)    # F.leaky_relu(., 0.1)


# ------------------------------- wrappers ------------------------------------
def rating_layer_forward(emb_scaled, w_packed, sel_mask, g_collapse, *, row_tile=512):
    Np, D = emb_scaled.shape
    RHp = w_packed.shape[1]
    Hp = g_collapse.shape[1]
    tm = Np if Np <= row_tile else row_tile
    assert Np % tm == 0, "pad the unique-node axis to a multiple of the row tile"
    return pl.pallas_call(
        rating_layer_kernel,
        out_shape=jax.ShapeDtypeStruct((Np, Hp), jnp.bfloat16),
        grid=(Np // tm,),
        in_specs=[
            pl.BlockSpec((tm, D), lambda i: (i, 0)),
            pl.BlockSpec((D, RHp), lambda i: (0, 0)),
            pl.BlockSpec((tm, RHp), lambda i: (i, 0)),
            pl.BlockSpec((RHp, Hp), lambda i: (0, 0)),
        ],
        out_specs=pl.BlockSpec((tm, Hp), lambda i: (i, 0)),
        compiler_params=pltpu.CompilerParams(
            dimension_semantics=("parallel",),  # row tiles independent -> v7x 2-TC sharding
        ),
    )(emb_scaled, w_packed, sel_mask, g_collapse)


def aggregate_sage_forward(adj, hidden_pad, w2t_pad, *, row_tile=512):
    Mp, Np = adj.shape
    Hp = hidden_pad.shape[1]
    Op = w2t_pad.shape[1]
    tm = Mp if Mp <= row_tile else row_tile
    assert Mp % tm == 0
    # TODO(synk): at production Np the (Np, Hp) hidden slab should get its own reduction
    # grid axis instead of being fully VMEM-resident.
    return pl.pallas_call(
        aggregate_sage_kernel,
        out_shape=jax.ShapeDtypeStruct((Mp, Op), jnp.float32),
        grid=(Mp // tm,),
        in_specs=[
            pl.BlockSpec((tm, Np), lambda i: (i, 0)),
            pl.BlockSpec((Np, Hp), lambda i: (0, 0)),
            pl.BlockSpec((Hp, Op), lambda i: (0, 0)),
        ],
        out_specs=pl.BlockSpec((tm, Op), lambda i: (i, 0)),
        compiler_params=pltpu.CompilerParams(dimension_semantics=("parallel",)),
    )(adj, hidden_pad, w2t_pad)


# ------------------------- graph bookkeeping (glue) ---------------------------
def build_rating_assignment(nodes, nodes_before, node_type,
                            rating_distrib_movie, rating_distrib_user):
    """Replicates RatingLayer.forward's python edge loop: for every unique-node slot,
    the (rating index, 1/c_ij) of the LAST edge writing it (torch overwrites)."""
    unique_nodes_list, unique_nodes, samp_neighs, samp_neighs_ratings = nodes_before
    assert len(nodes) == len(samp_neighs_ratings)
    N = len(unique_nodes)
    r_idx = [-1] * N
    scale = [0.0] * N
    for i, samp_neigh in enumerate(samp_neighs_ratings):
        for neigh_node in samp_neigh:
            index = unique_nodes[neigh_node[0]]
            rating = neigh_node[1]
            param_index = int(rating / 0.5) - 1
            if node_type == 'user':
                n_self = rating_distrib_user[nodes[i]][param_index]
                n_neigh = rating_distrib_movie[neigh_node[0]][param_index]
            else:
                n_self = rating_distrib_movie[nodes[i]][param_index]
                n_neigh = rating_distrib_user[neigh_node[0]][param_index]
            c_ij = math.sqrt(n_self * n_neigh)
            r_idx[index] = param_index
            scale[index] = 1.0 / c_ij
    assert all(r >= 0 for r in r_idx), "every unique node must be written (torch stack of None fails)"
    return r_idx, scale


def pack_rating_weights(weights, compute_dtype=jnp.bfloat16):
    """(R, H, D) torch-layout weights -> lane-dense packed operands.
    w_packed[:, r*H + h] = weights[r, h, :]   shape (D, RHp)
    g_collapse[r*H + h, h] = 1                shape (RHp, Hp)"""
    R, H, D = weights.shape
    RHp = _round_up(R * H, 128)
    Hp = _round_up(H, 128)
    w_packed = jnp.zeros((D, RHp), jnp.float32)
    w_packed = w_packed.at[:, :R * H].set(jnp.transpose(weights, (2, 0, 1)).reshape(D, R * H))
    rows = (jnp.arange(R)[:, None] * H + jnp.arange(H)[None, :]).reshape(-1)
    cols = jnp.tile(jnp.arange(H), R)
    g_collapse = jnp.zeros((RHp, Hp), jnp.float32).at[rows, cols].set(1.0)
    return w_packed.astype(compute_dtype), g_collapse.astype(compute_dtype)


def build_row_selector(r_idx, Np, H, RHp, compute_dtype=jnp.bfloat16):
    """One-hot (over rating blocks of width H) selector, one row per unique node."""
    N = len(r_idx)
    r_arr = jnp.full((Np,), -1, jnp.int32).at[:N].set(jnp.array(r_idx, jnp.int32))
    col_block = (jnp.arange(RHp) // H)[None, :]
    return (col_block == r_arr[:, None]).astype(compute_dtype)


def graphsage2_layer(nodes, nodes_before, embed_matrix, node_type,
                     rating_weights, sage_weight,
                     rating_distrib_movie, rating_distrib_user,
                     compute_dtype=jnp.bfloat16):
    """One GraphSage2 layer: RatingLayer -> SUM aggregate -> SageLayer2."""
    # TODO(synk): random neighbor sampling / unique-node dict construction
    # (_get_unique_neighs_list) and the multi-layer to_gen dispatch remain host-side
    # Python bookkeeping, exactly as in the torch module.
    unique_nodes_list, unique_nodes, samp_neighs, _ = nodes_before
    N = len(unique_nodes)
    M = len(nodes)
    R, H, D = rating_weights.shape
    O = sage_weight.shape[0]

    r_idx, scale = build_rating_assignment(nodes, nodes_before, node_type,
                                           rating_distrib_movie, rating_distrib_user)

    Np = _round_up(N, 8)
    Mp = _round_up(M, 8)
    RHp = _round_up(R * H, 128)
    Hp = _round_up(H, 128)
    Op = _round_up(O, 128)

    # Fold the per-row 1/c_ij scale into the embeddings (drops the (R, N, 1) sel tensor).
    scale_col = jnp.zeros((Np, 1), jnp.float32).at[:N, 0].set(jnp.array(scale, jnp.float32))
    emb_pad = jnp.zeros((Np, D), jnp.float32).at[:N].set(embed_matrix)
    emb_scaled = (scale_col * emb_pad).astype(compute_dtype)

    w_packed, g_collapse = pack_rating_weights(rating_weights, compute_dtype)
    sel_mask = build_row_selector(r_idx, Np, H, RHp, compute_dtype)

    hidden_pad = rating_layer_forward(emb_scaled, w_packed, sel_mask, g_collapse)

    # SUM-aggregation mask (GraphSage2.aggregate, agg_func='SUM'); 0/1 is exact in bf16.
    # TODO(synk): MEAN / MAX agg_func branches not ported (module default is 'SUM').
    rows, cols = [], []
    for i, samp_neigh in enumerate(samp_neighs):
        for n in samp_neigh:
            rows.append(i)
            cols.append(unique_nodes[n])
    adj = (jnp.zeros((Mp, Np), jnp.float32)
           .at[jnp.array(rows), jnp.array(cols)].set(1.0)).astype(compute_dtype)

    # SageLayer2 weight, pre-transposed + zero-padded to a lane-dense width.
    w2t_pad = (jnp.zeros((Hp, Op), jnp.float32)
               .at[:H, :O].set(sage_weight.T)).astype(compute_dtype)

    out_pad = aggregate_sage_forward(adj, hidden_pad, w2t_pad)

    aux = dict(r_idx=r_idx, scale=scale, adj=adj, w2t_pad=w2t_pad,
               emb_scaled=emb_scaled, w_packed=w_packed,
               sel_mask=sel_mask, g_collapse=g_collapse)
    return out_pad[:M, :O], hidden_pad[:N, :H].astype(jnp.float32), aux


def xavier_uniform(key, shape):
    fan_out, fan_in = shape  # torch layout (out_features, in_features)
    bound = math.sqrt(6.0 / (fan_in + fan_out))
    return jax.random.uniform(key, shape, dtype=jnp.float32, minval=-bound, maxval=bound)


# ---------------------------------- demo --------------------------------------
if __name__ == "__main__":
    key = jax.random.PRNGKey(0)

    input_size = 32      # D
    hidden_size = 32     # H
    out_size = 32        # O (SageLayer2 output)
    num_ratings = 10     # ratings 0.5, 1.0, ..., 5.0
    total_movies = 24
    num_unique = 16      # N unique neighbor (movie) nodes
    num_users = 4        # M batch nodes

    keys = jax.random.split(key, num_ratings + 3)
    rating_weights = jnp.stack(
        [xavier_uniform(keys[r], (hidden_size, input_size)) for r in range(num_ratings)])
    sage_weight = xavier_uniform(keys[num_ratings], (out_size, hidden_size))
    pre_hidden_embs = jax.random.normal(keys[num_ratings + 1], (total_movies, input_size),
                                        dtype=jnp.float32)

    # Deterministic synthetic graph: 4 users, each with 4 distinct movie neighbors.
    unique_nodes_list = [100 + j for j in range(num_unique)]
    unique_nodes = {m: j for j, m in enumerate(unique_nodes_list)}
    nodes = list(range(num_users))
    samp_neighs_ratings, samp_neighs = [], []
    for i in range(num_users):
        edges = []
        for k in range(4):
            j = 4 * i + k
            rating = 0.5 * (((i + j) % num_ratings) + 1)
            edges.append((unique_nodes_list[j], rating))
        samp_neighs_ratings.append(edges)
        samp_neighs.append({m for m, _ in edges})
    nodes_before = (unique_nodes_list, unique_nodes, samp_neighs, samp_neighs_ratings)

    rating_distrib_user = {u: [((u * 7 + r * 3) % 5) + 1 for r in range(num_ratings)] for u in nodes}
    rating_distrib_movie = {m: [((m * 5 + r * 2) % 4) + 1 for r in range(num_ratings)]
                            for m in unique_nodes_list}

    # embed_matrix = pre_hidden_embs[unique_nodes_list] branch of RatingLayer.forward
    movie_row = {m: (m % total_movies) for m in unique_nodes_list}
    gather_rows = jnp.array([movie_row[m] for m in unique_nodes_list], dtype=jnp.int32)
    embed_matrix = pre_hidden_embs[gather_rows]  # (N, D)

    out, hidden, aux = graphsage2_layer(
        nodes, nodes_before, embed_matrix, 'user',
        rating_weights, sage_weight, rating_distrib_movie, rating_distrib_user)
    out = jax.block_until_ready(out)

    # --- reference 1: exact-f32 torch semantics of the full layer ---
    r_arr = jnp.array(aux['r_idx'])
    s_arr = jnp.array(aux['scale'], jnp.float32)
    hidden_t = s_arr[:, None] * jnp.einsum('nd,nhd->nh', embed_matrix, rating_weights[r_arr])
    adj_mn = aux['adj'].astype(jnp.float32)[:num_users, :num_unique]
    agg_t = adj_mn @ hidden_t
    comb_t = jnp.where(agg_t >= 0, agg_t, 0.1 * agg_t)
    out_t = comb_t @ sage_weight.T
    out_t = jnp.where(out_t >= 0, out_t, 0.1 * out_t)

    # --- reference 2: plain-JAX replica of the kernel pipeline (matched precision) ---
    wide_r = jnp.dot(aux['emb_scaled'], aux['w_packed'], preferred_element_type=jnp.float32)
    masked_r = (aux['sel_mask'] * wide_r).astype(jnp.bfloat16)
    hid_r = jnp.dot(masked_r, aux['g_collapse'],
                    preferred_element_type=jnp.float32).astype(jnp.bfloat16)
    agg_r = jnp.dot(aux['adj'], hid_r, preferred_element_type=jnp.float32)
    comb_r = jnp.where(agg_r >= 0, agg_r, 0.1 * agg_r)
    out_r = jnp.dot(comb_r.astype(jnp.bfloat16), aux['w2t_pad'],
                    preferred_element_type=jnp.float32)
    out_r = jnp.where(out_r >= 0, out_r, 0.1 * out_r)[:num_users, :out_size]

    assert out.shape == (num_users, out_size)
    assert hidden.shape == (num_unique, hidden_size)
    assert jnp.allclose(out, out_r, atol=3e-2, rtol=3e-2), "mismatch vs matched-precision reference"
    assert jnp.allclose(out, out_t, atol=1.5e-1, rtol=1e-1), "mismatch vs f32 torch-semantics reference"

    print("KERNEL_OK")
</pallas_src>

<mosaic_0001>
module attributes {stable_mosaic.version = 11 : i64} {
  func.func @rating_layer_kernel(%arg0: i32, %arg1: memref<16x32xbf16, #tpu.memory_space<vmem>>, %arg2: memref<32x384xbf16, #tpu.memory_space<vmem>>, %arg3: memref<16x384xbf16, #tpu.memory_space<vmem>>, %arg4: memref<384x128xbf16, #tpu.memory_space<vmem>>, %arg5: memref<16x128xbf16, #tpu.memory_space<vmem>>) attributes {dimension_semantics = [#tpu.dimension_semantics<parallel>], iteration_bounds = array<i64: 1>, scalar_prefetch = 0 : i64, scratch_operands = 0 : i64, tpu.core_type = #tpu.core_type<tc>, window_params = [{transform_indices = @transform_0, window_bounds = array<i64: 16, 32>}, {pipeline_mode = #tpu.pipeline_mode<synchronous>, transform_indices = @transform_1, window_bounds = array<i64: 32, 384>}, {transform_indices = @transform_2, window_bounds = array<i64: 16, 384>}, {pipeline_mode = #tpu.pipeline_mode<synchronous>, transform_indices = @transform_3, window_bounds = array<i64: 384, 128>}, {transform_indices = @transform_4, window_bounds = array<i64: 16, 128>}]} {
    %c0 = arith.constant 0 : index
    %c0_0 = arith.constant 0 : index
    %0 = vector.load %arg1[%c0, %c0_0] : memref<16x32xbf16, #tpu.memory_space<vmem>>, vector<16x32xbf16>
    %c0_1 = arith.constant 0 : index
    %c0_2 = arith.constant 0 : index
    %1 = vector.load %arg2[%c0_1, %c0_2] : memref<32x384xbf16, #tpu.memory_space<vmem>>, vector<32x384xbf16>
    %cst = arith.constant dense<0.000000e+00> : vector<16x384xf32>
    %2 = tpu.matmul %0, %1, %cst {dimension_numbers = #tpu.dot_dimension_numbers<[1], [0], [0], [1], [0, 0, 1, 1], [], []>} : vector<16x32xbf16>, vector<32x384xbf16>, vector<16x384xf32> -> vector<16x384xf32>
    %c0_3 = arith.constant 0 : index
    %c0_4 = arith.constant 0 : index
    %3 = vector.load %arg3[%c0_3, %c0_4] : memref<16x384xbf16, #tpu.memory_space<vmem>>, vector<16x384xbf16>
    %4 = arith.extf %3 : vector<16x384xbf16> to vector<16x384xf32>
    %5 = arith.mulf %4, %2 : vector<16x384xf32>
    %6 = arith.truncf %5 : vector<16x384xf32> to vector<16x384xbf16>
    %c0_5 = arith.constant 0 : index
    %c0_6 = arith.constant 0 : index
    %7 = vector.load %arg4[%c0_5, %c0_6] : memref<384x128xbf16, #tpu.memory_space<vmem>>, vector<384x128xbf16>
    %cst_7 = arith.constant dense<0.000000e+00> : vector<16x128xf32>
    %8 = tpu.matmul %6, %7, %cst_7 {dimension_numbers = #tpu.dot_dimension_numbers<[1], [0], [0], [1], [0, 0, 1, 1], [], []>} : vector<16x384xbf16>, vector<384x128xbf16>, vector<16x128xf32> -> vector<16x128xf32>
    %9 = arith.truncf %8 : vector<16x128xf32> to vector<16x128xbf16>
    %c0_8 = arith.constant 0 : index
    %c0_9 = arith.constant 0 : index
    %10 = vector.load %arg5[%c0_8, %c0_9] : memref<16x128xbf16, #tpu.memory_space<vmem>>, vector<16x128xbf16>
    tpu.vector_store %arg5[%c0_8, %c0_9], %9 {strides = array<i32>} : memref<16x128xbf16, #tpu.memory_space<vmem>>, vector<16x128xbf16>,
    return
  }
  func.func @transform_0(%arg0: i32) -> (i32, i32) {
    %c0_i32 = arith.constant 0 : i32
    %c0_i32_0 = arith.constant 0 : i32
    return %arg0, %c0_i32 : i32, i32
  }
  func.func @transform_1(%arg0: i32) -> (i32, i32) {
    %c0_i32 = arith.constant 0 : i32
    %c0_i32_0 = arith.constant 0 : i32
    %c0_i32_1 = arith.constant 0 : i32
    return %c0_i32, %c0_i32_0 : i32, i32
  }
  func.func @transform_2(%arg0: i32) -> (i32, i32) {
    %c0_i32 = arith.constant 0 : i32
    %c0_i32_0 = arith.constant 0 : i32
    return %arg0, %c0_i32 : i32, i32
  }
  func.func @transform_3(%arg0: i32) -> (i32, i32) {
    %c0_i32 = arith.constant 0 : i32
    %c0_i32_0 = arith.constant 0 : i32
    %c0_i32_1 = arith.constant 0 : i32
    return %c0_i32, %c0_i32_0 : i32, i32
  }
  func.func @transform_4(%arg0: i32) -> (i32, i32) {
    %c0_i32 = arith.constant 0 : i32
    %c0_i32_0 = arith.constant 0 : i32
    return %arg0, %c0_i32 : i32, i32
  }
}

</mosaic_0001>

<llo_original>
// kernel: tpu_custom_call.1
$region0: #{tpu_custom_call.1}
  #allocation0 [shape = 'u32[]', space=smem, size = 0x4, offset = 0x4, fixed_abs, tag = 'smem constant byte address 0x4 - core index']
  #allocation1 [shape = 'u32[144,128]{1,0:T(1,128)}', space=vmem, size = 0x12000, scoped, tag = 'internal scratch']
  %s0 = inlined_call_operand.hbm [shape: bf16[16,32], index: 0, kind: input, shape index: {}]
  %s1 = inlined_call_operand.hbm [shape: bf16[32,384], index: 1, kind: input, shape index: {}]
  %s2 = inlined_call_operand.hbm [shape: bf16[16,384], index: 2, kind: input, shape index: {}]
  %s3 = inlined_call_operand.hbm [shape: bf16[384,128], index: 3, kind: input, shape index: {}]
  %s4 = inlined_call_operand.hbm [shape: bf16[16,128], index: 4, kind: output, shape index: {}]
  %s5 = sld [smem:[#allocation0]]
  $region42: #{tpu_custom_call.1} parent=0
    _
  %s7 = ssub.s32 1, %s5
  %s8 = scalar_select 0, %s7, %s5
  $region1: #{tpu_custom_call.1} parent=0
    #allocation2 [shape = 'u8[4096]{0}', space=vmem, size = 0x1000, scoped, tag = 'input window, operand 0, single buffered']
    #allocation3 [shape = 's32[1]{0}', space=sflag, size = 0x4, scoped, tag = 'scoped memory for tpu_custom_call.1']
    #allocation4 [shape = 's32[1]{0}', space=sflag, size = 0x4, scoped, tag = 'scoped memory for tpu_custom_call.1']
    #allocation5 [shape = 'u8[24576]{0}', space=vmem, size = 0x6000, scoped, tag = 'input window, operand 1, single buffered']
    #allocation6 [shape = 's32[1]{0}', space=sflag, size = 0x4, scoped, tag = 'scoped memory for tpu_custom_call.1']
    #allocation7 [shape = 'u8[12288]{0}', space=vmem, size = 0x3000, scoped, tag = 'input window, operand 2, single buffered']
    #allocation8 [shape = 'u8[98304]{0}', space=vmem, size = 0x18000, scoped, tag = 'input window, operand 3, single buffered']
    #allocation9 [shape = 's32[1]{0}', space=sflag, size = 0x4, scoped, tag = 'scoped memory for tpu_custom_call.1']
    #allocation10 [shape = 'u8[4096]{0}', space=vmem, size = 0x1000, scoped, tag = 'output window, operand 0, single buffered']
    %9 = vsyncpa [#allocation3], 0
    %10 = vsyncpa [#allocation6], 0
    %11 = vsyncpa [#allocation9], 0
    %12 = vsyncpa [#allocation4], 0
    // Predicated region
    $region2: #{tpu_custom_call.1} parent=1 // pred_check
      _
    $region3: #{tpu_custom_call.1} parent=1 // pred_check_branch
      %14 = sbr.rel (0) target = $region5
    $region4: #{tpu_custom_call.1} parent=1 // pred_region
      %s16 = ssub.s32 128, 128
      %17 = vsyncadd [#allocation3], %s16
      %s18 = sshll.u32 [#allocation2], 4
      %s19 = int_to_ptr.vmem [resolvable:$true] %s18
      %24 = dma.hbm_to_vmem [thread:$0]  %s0, 128, %s19, [#allocation3], 64, 64, 4
    $region5: #{tpu_custom_call.1} parent=1 // pred_fallthru
      _
    // Predicated region
    $region6: #{tpu_custom_call.1} parent=1 // pred_check
      _
    $region7: #{tpu_custom_call.1} parent=1 // pred_check_branch
      %26 = sbr.rel (0) target = $region9
    $region8: #{tpu_custom_call.1} parent=1 // pred_region
      %s28 = ssub.s32 768, 768
      %29 = vsyncadd [#allocation6], %s28
      %s30 = sshll.u32 [#allocation5], 4
      %s31 = int_to_ptr.vmem [resolvable:$true] %s30
      %36 = dma.hbm_to_vmem [thread:$0]  %s1, 768, %s31, [#allocation6], 192, 192, 12
    $region9: #{tpu_custom_call.1} parent=1 // pred_fallthru
      _
    // Predicated region
    $region10: #{tpu_custom_call.1} parent=1 // pred_check
      _
    $region11: #{tpu_custom_call.1} parent=1 // pred_check_branch
      %38 = sbr.rel (0) target = $region13
    $region12: #{tpu_custom_call.1} parent=1 // pred_region
      %s40 = ssub.s32 384, 384
      %41 = vsyncadd [#allocation6], %s40
      %s42 = sshll.u32 [#allocation7], 4
      %s43 = int_to_ptr.vmem [resolvable:$true] %s42
      %48 = dma.hbm_to_vmem [thread:$0]  %s2, 384, %s43, [#allocation6], 192, 192, 12
    $region13: #{tpu_custom_call.1} parent=1 // pred_fallthru
      _
    // Predicated region
    $region14: #{tpu_custom_call.1} parent=1 // pred_check
      _
    $region15: #{tpu_custom_call.1} parent=1 // pred_check_branch
      %50 = sbr.rel (0) target = $region17
    $region16: #{tpu_custom_call.1} parent=1 // pred_region
      %s52 = ssub.s32 3072, 3072
      %53 = vsyncadd [#allocation9], %s52
      %s54 = sshll.u32 [#allocation8], 4
      %s55 = int_to_ptr.vmem [resolvable:$true] %s54
      %60 = dma.hbm_to_vmem [thread:$0]  %s3, 3072, %s55, [#allocation9], 64, 64, 4
    $region17: #{tpu_custom_call.1} parent=1 // pred_fallthru
      _
    // Predicated region
    $region18: #{tpu_custom_call.1} parent=1 // pred_check
      _
    $region19: #{tpu_custom_call.1} parent=1 // pred_check_branch
      %62 = sbr.rel (0) target = $region21
    $region20: #{tpu_custom_call.1} parent=1 // pred_region
      %63 = dma.done [#allocation3], 128
    $region21: #{tpu_custom_call.1} parent=1 // pred_fallthru
      _
    // Predicated region
    $region22: #{tpu_custom_call.1} parent=1 // pred_check
      _
    $region23: #{tpu_custom_call.1} parent=1 // pred_check_branch
      %65 = sbr.rel (0) target = $region25
    $region24: #{tpu_custom_call.1} parent=1 // pred_region
      %66 = dma.done [#allocation6], 768
    $region25: #{tpu_custom_call.1} parent=1 // pred_fallthru
      _
    // Predicated region
    $region26: #{tpu_custom_call.1} parent=1 // pred_check
      _
    $region27: #{tpu_custom_call.1} parent=1 // pred_check_branch
      %68 = sbr.rel (0) target = $region29
    $region28: #{tpu_custom_call.1} parent=1 // pred_region
      %69 = dma.done [#allocation6], 384
    $region29: #{tpu_custom_call.1} parent=1 // pred_fallthru
      _
    // Predicated region
    $region30: #{tpu_custom_call.1} parent=1 // pred_check
      _
    $region31: #{tpu_custom_call.1} parent=1 // pred_check_branch
      %71 = sbr.rel (0) target = $region33
    $region32: #{tpu_custom_call.1} parent=1 // pred_region
      %72 = dma.done [#allocation9], 3072
    $region33: #{tpu_custom_call.1} parent=1 // pred_fallthru
      _
    %v74 = vld [vmem:[#allocation2] sm:$0xf]
    %v75 = vld [vmem:[#allocation2 + $0x4] sm:$0xf]
    %v76 = vld [vmem:[#allocation5] sm:$0xff]
    %v77 = vld [vmem:[#allocation5 + $0x8] sm:$0xf]
    %v78 = vld [vmem:[#allocation5 + $0xc] sm:$0xff]
    %v79 = vld [vmem:[#allocation5 + $0x14] sm:$0xf]
    %v80 = vld [vmem:[#allocation5 + $0x18] sm:$0xff]
    %v81 = vld [vmem:[#allocation5 + $0x20] sm:$0xf]
    %v82 = vld [vmem:[#allocation5 + $0x24] sm:$0xff]
    %v83 = vld [vmem:[#allocation5 + $0x2c] sm:$0xf]
    %v86 = vunpack.c.l.b16 %v74
    %v87 = vunpack.c.l.b16 %v75
    %v88 = vpack.c.b16 %v87, %v86
    %v97 = vunpack.c.l.b16 %v76
    %v98 = vunpack.c.h.b16 %v76
    %v99 = vunpack.c.l.b16 %v77
    %v100 = vunpack.c.l.b16 %v78
    %v101 = vunpack.c.h.b16 %v78
    %v102 = vunpack.c.l.b16 %v79
    %v103 = vunpack.c.l.b16 %v80
    %v104 = vunpack.c.h.b16 %v80
    %v105 = vunpack.c.l.b16 %v81
    %v106 = vunpack.c.l.b16 %v82
    %v107 = vunpack.c.h.b16 %v82
    %v108 = vunpack.c.l.b16 %v83
    %v109 = vpack.c.b16 %v100, %v97
    %v110 = vpack.c.b16 %v101, %v98
    %v111 = vpack.c.b16 %v102, %v99
    %v112 = vpack.c.b16 %v106, %v103
    %v113 = vpack.c.b16 %v107, %v104
    %v114 = vpack.c.b16 %v108, %v105
    %vm121 = vcmask 261120
    %v123 = vsel %vm121, %v88, 0
    %125 = vmatprep.subr.bf16.mxu0 %v110
    %126 = vmatpush1.bf16.msra.mxu0 %v109
    %127 = vmatprep.subr.bf16.mxu0 %v113
    %128 = vmatpush1.bf16.msra.mxu0 %v112
    %129 = vmatprep.subr.bf16.mxu0 0
    %130 = vmatpush1.bf16.msra.mxu0 0
    %131 = vmatprep.subr.bf16.mxu0 0
    %132 = vmatpush1.bf16.msra.mxu0 0
    %133 = vmatprep.subr.bf16.mxu0 0
    %134 = vmatpush1.bf16.msra.mxu0 0
    %135 = vmatprep.subr.bf16.mxu0 0
    %136 = vmatpush1.bf16.msra.mxu0 0
    %137 = vmatprep.subr.bf16.mxu0 0
    %138 = vmatpush1.bf16.msra.mxu0 0
    %139 = vmatprep.subr.bf16.mxu0 0
    %140 = vmatpush1.bf16.msra.mxu0 0
    %141 = vmatprep.subr.bf16.mxu0 0
    %142 = vmatpush1.bf16.msra.mxu0 0
    %143 = vmatprep.subr.bf16.mxu0 0
    %144 = vmatpush1.bf16.msra.mxu0 0
    %145 = vmatprep.subr.bf16.mxu0 0
    %146 = vmatpush1.bf16.msra.mxu0 0
    %147 = vmatprep.subr.bf16.mxu0 0
    %148 = vmatpush1.bf16.msra.mxu0 0
    %149 = vmatprep.subr.bf16.mxu0 0
    %150 = vmatpush1.bf16.msra.mxu0 0
    %151 = vmatprep.subr.bf16.mxu0 0
    %152 = vmatpush1.bf16.msra.mxu0 0
    %153 = vmatprep.subr.bf16.mxu0 0
    %154 = vmatpush1.bf16.msra.mxu0 0
    %155 = vmatprep.subr.bf16.mxu0 0
    %156 = vmatpush1.bf16.msra.mxu0 0
    %157 = vmatprep.mubr.bf16.mxu0 0
    %158 = vmatmul.mubr.bf16.gmra.mrb[0].mxu0 %v123
    %v159 = vpop.f32.mrb[0].mxu0
    %v160 = vadd.f32 0.0, %v159
    %v161 = vpop.f32.mrb[0].mxu0
    %v162 = vadd.f32 0.0, %v161
    %v163 = vpop.f32.mrb[0].mxu0
    %v164 = vadd.f32 0.0, %v163
    %v165 = vpop.f32.mrb[0].mxu0
    %v166 = vadd.f32 0.0, %v165
    %167 = vdwg.mxu0
    %168 = vmatprep.subr.bf16.mxu0 0
    %169 = vmatpush1.bf16.msra.mxu0 %v111
    %170 = vmatprep.subr.bf16.mxu0 0
    %171 = vmatpush1.bf16.msra.mxu0 %v114
    %172 = vmatprep.subr.bf16.mxu0 0
    %173 = vmatpush1.bf16.msra.mxu0 0
    %174 = vmatprep.subr.bf16.mxu0 0
    %175 = vmatpush1.bf16.msra.mxu0 0
    %176 = vmatprep.subr.bf16.mxu0 0
    %177 = vmatpush1.bf16.msra.mxu0 0
    %178 = vmatprep.subr.bf16.mxu0 0
    %179 = vmatpush1.bf16.msra.mxu0 0
    %180 = vmatprep.subr.bf16.mxu0 0
    %181 = vmatpush1.bf16.msra.mxu0 0
    %182 = vmatprep.subr.bf16.mxu0 0
    %183 = vmatpush1.bf16.msra.mxu0 0
    %184 = vmatprep.subr.bf16.mxu0 0
    %185 = vmatpush1.bf16.msra.mxu0 0
    %186 = vmatprep.subr.bf16.mxu0 0
    %187 = vmatpush1.bf16.msra.mxu0 0
    %188 = vmatprep.subr.bf16.mxu0 0
    %189 = vmatpush1.bf16.msra.mxu0 0
    %190 = vmatprep.subr.bf16.mxu0 0
    %191 = vmatpush1.bf16.msra.mxu0 0
    %192 = vmatprep.subr.bf16.mxu0 0
    %193 = vmatpush1.bf16.msra.mxu0 0
    %194 = vmatprep.subr.bf16.mxu0 0
    %195 = vmatpush1.bf16.msra.mxu0 0
    %196 = vmatprep.subr.bf16.mxu0 0
    %197 = vmatpush1.bf16.msra.mxu0 0
    %198 = vmatprep.subr.bf16.mxu0 0
    %199 = vmatpush1.bf16.msra.mxu0 0
    %200 = vmatprep.mubr.bf16.mxu0 0
    %201 = vmatmul.mubr.bf16.gmra.mrb[0].mxu0 %v123
    %v202 = vpop.f32.mrb[0].mxu0
    %v203 = vadd.f32 0.0, %v202
    %v204 = vpop.f32.mrb[0].mxu0
    %v205 = vpop.f32.mrb[0].mxu0
    %v206 = vadd.f32 0.0, %v205
    %v207 = vpop.f32.mrb[0].mxu0
    %208 = vdwg.mxu0
    %v209 = vld [vmem:[#allocation7] sm:$0xff]
    %v210 = vld [vmem:[#allocation7 + $0x8] sm:$0xf]
    %v211 = vld [vmem:[#allocation7 + $0xc] sm:$0xff]
    %v212 = vld [vmem:[#allocation7 + $0x14] sm:$0xf]
    %v213 = vunpack.c.l.bf16 %v209
    %v214 = vunpack.c.h.bf16 %v209
    %v215 = vunpack.c.l.bf16 %v210
    %v216 = vunpack.c.l.bf16 %v211
    %v217 = vunpack.c.h.bf16 %v211
    %v218 = vunpack.c.l.bf16 %v212
    %v219 = vmul.f32 %v213, %v160
    %v220 = vmul.f32 %v214, %v162
    %v221 = vmul.f32 %v215, %v203
    %v222 = vmul.f32 %v216, %v164
    %v223 = vmul.f32 %v217, %v166
    %v224 = vmul.f32 %v218, %v206
    %v225 = vpack.c.bf16 %v222, %v219
    %v226 = vpack.c.bf16 %v223, %v220
    %v227 = vpack.c.bf16 %v224, %v221
    %v228 = vld [vmem:[#allocation8] sm:$0xf]
    %v229 = vld [vmem:[#allocation8 + $0x4] sm:$0xf]
    %v230 = vld [vmem:[#allocation8 + $0x8] sm:$0xf]
    %v231 = vld [vmem:[#allocation8 + $0xc] sm:$0xf]
    %v232 = vld [vmem:[#allocation8 + $0x10] sm:$0xf]
    %v233 = vld [vmem:[#allocation8 + $0x14] sm:$0xf]
    %v234 = vld [vmem:[#allocation8 + $0x18] sm:$0xf]
    %v235 = vld [vmem:[#allocation8 + $0x1c] sm:$0xf]
    %v236 = vld [vmem:[#allocation8 + $0x20] sm:$0xf]
    %v237 = vld [vmem:[#allocation8 + $0x24] sm:$0xf]
    %v238 = vld [vmem:[#allocation8 + $0x28] sm:$0xf]
    %v239 = vld [vmem:[#allocation8 + $0x2c] sm:$0xf]
    %v240 = vld [vmem:[#allocation8 + $0x30] sm:$0xf]
    %v241 = vld [vmem:[#allocation8 + $0x34] sm:$0xf]
    %v242 = vld [vmem:[#allocation8 + $0x38] sm:$0xf]
    %v243 = vld [vmem:[#allocation8 + $0x3c] sm:$0xf]
    %v244 = vld [vmem:[#allocation8 + $0x40] sm:$0xf]
    %v245 = vld [vmem:[#allocation8 + $0x44] sm:$0xf]
    %v246 = vld [vmem:[#allocation8 + $0x48] sm:$0xf]
    %v247 = vld [vmem:[#allocation8 + $0x4c] sm:$0xf]
    %v248 = vld [vmem:[#allocation8 + $0x50] sm:$0xf]
    %v249 = vld [vmem:[#allocation8 + $0x54] sm:$0xf]
    %v250 = vld [vmem:[#allocation8 + $0x58] sm:$0xf]
    %v251 = vld [vmem:[#allocation8 + $0x5c] sm:$0xf]
    %v252 = vld [vmem:[#allocation8 + $0x60] sm:$0xf]
    %v253 = vld [vmem:[#allocation8 + $0x64] sm:$0xf]
    %v254 = vld [vmem:[#allocation8 + $0x68] sm:$0xf]
    %v255 = vld [vmem:[#allocation8 + $0x6c] sm:$0xf]
    %v256 = vld [vmem:[#allocation8 + $0x70] sm:$0xf]
    %v257 = vld [vmem:[#allocation8 + $0x74] sm:$0xf]
    %v258 = vld [vmem:[#allocation8 + $0x78] sm:$0xf]
    %v259 = vld [vmem:[#allocation8 + $0x7c] sm:$0xf]
    %v260 = vld [vmem:[#allocation8 + $0x80] sm:$0xf]
    %v261 = vld [vmem:[#allocation8 + $0x84] sm:$0xf]
    %v262 = vld [vmem:[#allocation8 + $0x88] sm:$0xf]
    %v263 = vld [vmem:[#allocation8 + $0x8c] sm:$0xf]
    %v264 = vld [vmem:[#allocation8 + $0x90] sm:$0xf]
    %v265 = vld [vmem:[#allocation8 + $0x94] sm:$0xf]
    %v266 = vld [vmem:[#allocation8 + $0x98] sm:$0xf]
    %v267 = vld [vmem:[#allocation8 + $0x9c] sm:$0xf]
    %v268 = vld [vmem:[#allocation8 + $0xa0] sm:$0xf]
    %v269 = vld [vmem:[#allocation8 + $0xa4] sm:$0xf]
    %v270 = vld [vmem:[#allocation8 + $0xa8] sm:$0xf]
    %v271 = vld [vmem:[#allocation8 + $0xac] sm:$0xf]
    %v272 = vld [vmem:[#allocation8 + $0xb0] sm:$0xf]
    %v273 = vld [vmem:[#allocation8 + $0xb4] sm:$0xf]
    %v274 = vld [vmem:[#allocation8 + $0xb8] sm:$0xf]
    %v275 = vld [vmem:[#allocation8 + $0xbc] sm:$0xf]
    %v324 = vunpack.c.l.b16 %v228
    %v325 = vunpack.c.l.b16 %v229
    %v326 = vunpack.c.l.b16 %v230
    %v327 = vunpack.c.l.b16 %v231
    %v328 = vunpack.c.l.b16 %v232
    %v329 = vunpack.c.l.b16 %v233
    %v330 = vunpack.c.l.b16 %v234
    %v331 = vunpack.c.l.b16 %v235
    %v332 = vunpack.c.l.b16 %v236
    %v333 = vunpack.c.l.b16 %v237
    %v334 = vunpack.c.l.b16 %v238
    %v335 = vunpack.c.l.b16 %v239
    %v336 = vunpack.c.l.b16 %v240
    %v337 = vunpack.c.l.b16 %v241
    %v338 = vunpack.c.l.b16 %v242
    %v339 = vunpack.c.l.b16 %v243
    %v340 = vunpack.c.l.b16 %v244
    %v341 = vunpack.c.l.b16 %v245
    %v342 = vunpack.c.l.b16 %v246
    %v343 = vunpack.c.l.b16 %v247
    %v344 = vunpack.c.l.b16 %v248
    %v345 = vunpack.c.l.b16 %v249
    %v346 = vunpack.c.l.b16 %v250
    %v347 = vunpack.c.l.b16 %v251
    %v348 = vunpack.c.l.b16 %v252
    %v349 = vunpack.c.l.b16 %v253
    %v350 = vunpack.c.l.b16 %v254
    %v351 = vunpack.c.l.b16 %v255
    %v352 = vunpack.c.l.b16 %v256
    %v353 = vunpack.c.l.b16 %v257
    %v354 = vunpack.c.l.b16 %v258
    %v355 = vunpack.c.l.b16 %v259
    %v356 = vunpack.c.l.b16 %v260
    %v357 = vunpack.c.l.b16 %v261
    %v358 = vunpack.c.l.b16 %v262
    %v359 = vunpack.c.l.b16 %v263
    %v360 = vunpack.c.l.b16 %v264
    %v361 = vunpack.c.l.b16 %v265
    %v362 = vunpack.c.l.b16 %v266
    %v363 = vunpack.c.l.b16 %v267
    %v364 = vunpack.c.l.b16 %v268
    %v365 = vunpack.c.l.b16 %v269
    %v366 = vunpack.c.l.b16 %v270
    %v367 = vunpack.c.l.b16 %v271
    %v368 = vunpack.c.l.b16 %v272
    %v369 = vunpack.c.l.b16 %v273
    %v370 = vunpack.c.l.b16 %v274
    %v371 = vunpack.c.l.b16 %v275
    %v372 = vpack.c.b16 %v325, %v324
    %v373 = vpack.c.b16 %v327, %v326
    %v374 = vpack.c.b16 %v329, %v328
    %v375 = vpack.c.b16 %v331, %v330
    %v376 = vpack.c.b16 %v333, %v332
    %v377 = vpack.c.b16 %v335, %v334
    %v378 = vpack.c.b16 %v337, %v336
    %v379 = vpack.c.b16 %v339, %v338
    %v380 = vpack.c.b16 %v341, %v340
    %v381 = vpack.c.b16 %v343, %v342
    %v382 = vpack.c.b16 %v345, %v344
    %v383 = vpack.c.b16 %v347, %v346
    %v384 = vpack.c.b16 %v349, %v348
    %v385 = vpack.c.b16 %v351, %v350
    %v386 = vpack.c.b16 %v353, %v352
    %v387 = vpack.c.b16 %v355, %v354
    %v388 = vpack.c.b16 %v357, %v356
    %v389 = vpack.c.b16 %v359, %v358
    %v390 = vpack.c.b16 %v361, %v360
    %v391 = vpack.c.b16 %v363, %v362
    %v392 = vpack.c.b16 %v365, %v364
    %v393 = vpack.c.b16 %v367, %v366
    %v394 = vpack.c.b16 %v369, %v368
    %v395 = vpack.c.b16 %v371, %v370
    %420 = vmatprep.subr.bf16.mxu0 0
    %421 = vmatpush1.bf16.msra.mxu0 %v372
    %422 = vmatprep.subr.bf16.mxu0 0
    %423 = vmatpush1.bf16.msra.mxu0 %v373
    %424 = vmatprep.subr.bf16.mxu0 0
    %425 = vmatpush1.bf16.msra.mxu0 %v374
    %426 = vmatprep.subr.bf16.mxu0 0
    %427 = vmatpush1.bf16.msra.mxu0 %v375
    %428 = vmatprep.subr.bf16.mxu0 0
    %429 = vmatpush1.bf16.msra.mxu0 %v376
    %430 = vmatprep.subr.bf16.mxu0 0
    %431 = vmatpush1.bf16.msra.mxu0 %v377
    %432 = vmatprep.subr.bf16.mxu0 0
    %433 = vmatpush1.bf16.msra.mxu0 %v378
    %434 = vmatprep.subr.bf16.mxu0 0
    %435 = vmatpush1.bf16.msra.mxu0 %v379
    %436 = vmatprep.subr.bf16.mxu0 0
    %437 = vmatpush1.bf16.msra.mxu0 %v380
    %438 = vmatprep.subr.bf16.mxu0 0
    %439 = vmatpush1.bf16.msra.mxu0 %v381
    %440 = vmatprep.subr.bf16.mxu0 0
    %441 = vmatpush1.bf16.msra.mxu0 %v382
    %442 = vmatprep.subr.bf16.mxu0 0
    %443 = vmatpush1.bf16.msra.mxu0 %v383
    %444 = vmatprep.subr.bf16.mxu0 0
    %445 = vmatpush1.bf16.msra.mxu0 %v384
    %446 = vmatprep.subr.bf16.mxu0 0
    %447 = vmatpush1.bf16.msra.mxu0 %v385
    %448 = vmatprep.subr.bf16.mxu0 0
    %449 = vmatpush1.bf16.msra.mxu0 %v386
    %450 = vmatprep.subr.bf16.mxu0 0
    %451 = vmatpush1.bf16.msra.mxu0 %v387
    %452 = vmatprep.mubr.bf16.mxu0 %v226
    %453 = vmatmul.mubr.bf16.gmra.mrb[0].mxu0 %v225
    %v454 = vpop.f32.mrb[0].mxu0
    %v455 = vadd.f32 0.0, %v454
    %v456 = vpop.f32.mrb[0].mxu0
    %v457 = vpop.f32.mrb[0].mxu0
    %v458 = vadd.f32 0.0, %v457
    %v459 = vpop.f32.mrb[0].mxu0
    %460 = vdwg.mxu0
    %461 = vmatprep.subr.bf16.mxu0 0
    %462 = vmatpush1.bf16.msra.mxu0 %v388
    %463 = vmatprep.subr.bf16.mxu0 0
    %464 = vmatpush1.bf16.msra.mxu0 %v389
    %465 = vmatprep.subr.bf16.mxu0 0
    %466 = vmatpush1.bf16.msra.mxu0 %v390
    %467 = vmatprep.subr.bf16.mxu0 0
    %468 = vmatpush1.bf16.msra.mxu0 %v391
    %469 = vmatprep.subr.bf16.mxu0 0
    %470 = vmatpush1.bf16.msra.mxu0 %v392
    %471 = vmatprep.subr.bf16.mxu0 0
    %472 = vmatpush1.bf16.msra.mxu0 %v393
    %473 = vmatprep.subr.bf16.mxu0 0
    %474 = vmatpush1.bf16.msra.mxu0 %v394
    %475 = vmatprep.subr.bf16.mxu0 0
    %476 = vmatpush1.bf16.msra.mxu0 %v395
    %477 = vmatprep.subr.bf16.mxu0 0
    %478 = vmatpush1.bf16.msra.mxu0 0
    %479 = vmatprep.subr.bf16.mxu0 0
    %480 = vmatpush1.bf16.msra.mxu0 0
    %481 = vmatprep.subr.bf16.mxu0 0
    %482 = vmatpush1.bf16.msra.mxu0 0
    %483 = vmatprep.subr.bf16.mxu0 0
    %484 = vmatpush1.bf16.msra.mxu0 0
    %485 = vmatprep.subr.bf16.mxu0 0
    %486 = vmatpush1.bf16.msra.mxu0 0
    %487 = vmatprep.subr.bf16.mxu0 0
    %488 = vmatpush1.bf16.msra.mxu0 0
    %489 = vmatprep.subr.bf16.mxu0 0
    %490 = vmatpush1.bf16.msra.mxu0 0
    %491 = vmatprep.subr.bf16.mxu0 0
    %492 = vmatpush1.bf16.msra.mxu0 0
    %493 = vmatprep.mubr.bf16.mxu0 0
    %494 = vmatmul.mubr.bf16.gmra.mrb[0].mxu0 %v227
    %v495 = vpop.f32.mrb[0].mxu0
    %v496 = vadd.f32 %v455, %v495
    %v497 = vpop.f32.mrb[0].mxu0
    %v498 = vpop.f32.mrb[0].mxu0
    %v499 = vadd.f32 %v458, %v498
    %v500 = vpop.f32.mrb[0].mxu0
    %501 = vdwg.mxu0
    %v502 = vpack.c.bf16 %v499, %v496
    %v504 = vunpack.c.l.b16 %v502
    %v505 = vunpack.c.h.b16 %v502
    %v506 = vpack.c.b16 %v504, %v504
    %v507 = vpack.c.b16 %v505, %v505
    %510 = vst [vmem:[#allocation10] sm:$0xf] %v506
    %511 = vst [vmem:[#allocation10 + $0x4] sm:$0xf] %v507
    // Predicated region
    $region34: #{tpu_custom_call.1} parent=1 // pred_check
      _
    $region35: #{tpu_custom_call.1} parent=1 // pred_check_branch
      %513 = sbr.rel (0) target = $region37
    $region36: #{tpu_custom_call.1} parent=1 // pred_region
      %s515 = ssub.s32 128, 128
      %516 = vsyncadd [#allocation4], %s515
      %s517 = sshll.u32 [#allocation10], 4
      %s518 = int_to_ptr.vmem [resolvable:$true] %s517
      %523 = dma.vmem_to_hbm [thread:$0]  %s518, 128, %s4, [#allocation4], 64, 64, 4
    $region37: #{tpu_custom_call.1} parent=1 // pred_fallthru
      _
    // Predicated region
    $region38: #{tpu_custom_call.1} parent=1 // pred_check
      _
    $region39: #{tpu_custom_call.1} parent=1 // pred_check_branch
      %525 = sbr.rel (0) target = $region41
    $region40: #{tpu_custom_call.1} parent=1 // pred_region
      %526 = dma.done [#allocation4], 128
    $region41: #{tpu_custom_call.1} parent=1 // pred_fallthru
      _
    %527 = vsyncpa [#allocation3], 1
    %528 = vsyncpa [#allocation6], 1
    %529 = vsyncpa [#allocation9], 1
    %530 = vsyncpa [#allocation4], 1

</llo_original>
